<compile_context>
chip_gen: v5e
topology: v5e:2x2
jax: 0.10.0
libtpu: 0.0.40
codegen_flags: <defaults>
</compile_context>

<pallas_src>
import functools

import jax
import jax.numpy as jnp
from jax import lax
from jax.experimental import pallas as pl
from jax.experimental.pallas import tpu as pltpu


def _round_up(x, m):
    return ((x + m - 1) // m) * m


def make_encoder_kernel(num_layers, t_block, b_pad):
    n_w = 3 * num_layers + 2  # per-layer (w_ih, w_hh, b) + (w_fc, b_fc)
    # Partial unroll: bounded code size, but enough visible iterations for the
    # scheduler to pipeline loads/stores around the serial matmul+tanh chain.
    unroll = t_block if t_block <= 8 else 8

    def kernel(x_ref, *refs):
        w_refs = refs[:n_w]
        out_ref = refs[n_w]
        h_ref = refs[n_w + 1]     # (num_layers, b_pad, h_pad) f32 — carries across blocks
        act_ref = refs[n_w + 2]   # (t_block*b_pad, h_pad) f32 — per-block activation slab

        tb = pl.program_id(0)

        @pl.when(tb == 0)
        def _():
            h_ref[...] = jnp.zeros_like(h_ref)

        for l in range(num_layers):
            w_ih = w_refs[3 * l][...]        # (in, H_pad)   bf16
            w_hh = w_refs[3 * l + 1][...]    # (H_pad, H_pad) bf16
            b = w_refs[3 * l + 2][...]       # (1, H_pad)    f32  (= b_ih + b_hh)

            # Hoisted input projection for ALL timesteps of this block: one big
            # bf16 MXU matmul with f32 accumulation, bias added once.
            src = x_ref[...] if l == 0 else act_ref[...]
            act_ref[...] = (
                jnp.dot(src.astype(jnp.bfloat16), w_ih,
                        preferred_element_type=jnp.float32) + b)

            # Serial recurrence: only tanh(pre_t + h @ W_hh) on the critical
            # path. pre_t is consumed in-place and overwritten with this
            # layer's output. h stays f32; only the MXU operand is bf16.
            def step(t, h, w_hh=w_hh):
                rows = pl.ds(pl.multiple_of(t * b_pad, b_pad), b_pad)
                pre_t = act_ref[rows, :]
                h_new = jnp.tanh(
                    pre_t + jnp.dot(h.astype(jnp.bfloat16), w_hh,
                                    preferred_element_type=jnp.float32))
                act_ref[rows, :] = h_new
                return h_new

            h_ref[l] = lax.fori_loop(0, t_block, step, h_ref[l], unroll=unroll)

        # Final Linear over the whole block (lane-dense (T_block*B_pad, H_pad) store).
        w_fc = w_refs[3 * num_layers][...]     # bf16
        b_fc = w_refs[3 * num_layers + 1][...]  # f32
        out_ref[...] = (
            jnp.dot(act_ref[...].astype(jnp.bfloat16), w_fc,
                    preferred_element_type=jnp.float32)
            + b_fc).astype(out_ref.dtype)

    return kernel


def encoder_forward(x, params, *, num_layers, hidden_dim, t_block=None):
    """x: (seq, batch, z_dim) -> (seq, batch, hidden_dim)."""
    seq_len, batch, z_dim = x.shape
    H = hidden_dim
    B_pad = _round_up(batch, 8)        # sublane alignment for per-timestep slices
    H_pad = _round_up(H, 128)          # lane-dense activations / stores
    x_item = x.dtype.itemsize
    out_item = x.dtype.itemsize        # output kept in input dtype (module semantics)

    # --- Generation-aware VMEM budget -------------------------------------
    try:
        vmem_cap = int(pltpu.get_tpu_info().vmem_capacity_bytes)
    except Exception:
        vmem_cap = 128 << 20
    vmem_budget = int(vmem_cap * 0.75)   # headroom for Mosaic scratch / DMA descriptors

    if t_block is None:
        # fixed VMEM: bf16 matmul weights + f32 biases (single-buffered),
        # f32 hidden-state carry, plus a safety margin.
        n_w_bytes = 0
        for l in range(num_layers):
            in_dim = z_dim if l == 0 else H_pad
            n_w_bytes += 2 * (in_dim * H_pad + H_pad * H_pad) + 4 * H_pad
        n_w_bytes += 2 * H_pad * H_pad + 4 * H_pad
        fixed = n_w_bytes + 4 * num_layers * B_pad * H_pad + (4 << 20)
        # per-timestep VMEM: double-buffered x / out blocks + f32 act slab.
        per_t = B_pad * (2 * z_dim * x_item + 2 * H_pad * out_item + H_pad * 4)
        t_cap = max(1, (vmem_budget - fixed) // per_t)
        t_block = int(min(seq_len, t_cap, 512))
    t_block = max(1, int(t_block))

    T_pad = _round_up(seq_len, t_block)
    n_blocks = T_pad // t_block

    # Zero-pad x (padded batch rows / trailing timesteps never affect real
    # outputs: the recurrence is row-independent and strictly forward in time).
    x_p = jnp.pad(x, ((0, T_pad - seq_len), (0, B_pad - batch), (0, 0)))
    x_flat = x_p.reshape(T_pad * B_pad, z_dim)

    def pad2(w, r, c):
        return jnp.pad(w, ((0, r - w.shape[0]), (0, c - w.shape[1])))

    # Matmul weights -> bf16 (f32 accumulation in-kernel); biases stay f32.
    const_spec = lambda shape: pl.BlockSpec(shape, lambda t: (0, 0),
                                            pipeline_mode=pl.Buffered(1))
    weight_args, weight_specs = [], []
    for l in range(num_layers):
        w_ih, w_hh, b = params["layers"][l]
        in_dim = z_dim if l == 0 else H_pad
        w_ih_p = pad2(w_ih, in_dim, H_pad).astype(jnp.bfloat16)
        w_hh_p = pad2(w_hh, H_pad, H_pad).astype(jnp.bfloat16)
        b_p = pad2(b, 1, H_pad)
        weight_args += [w_ih_p, w_hh_p, b_p]
        weight_specs += [const_spec(w_ih_p.shape), const_spec(w_hh_p.shape),
                         const_spec(b_p.shape)]
    w_fc, b_fc = params["fc"]
    w_fc_p = pad2(w_fc, H_pad, H_pad).astype(jnp.bfloat16)
    b_fc_p = pad2(b_fc, 1, H_pad)
    weight_args += [w_fc_p, b_fc_p]
    weight_specs += [const_spec(w_fc_p.shape), const_spec(b_fc_p.shape)]

    kernel = make_encoder_kernel(num_layers, t_block, B_pad)

    # VMEM actually needed with single-buffered weights.
    n_weight_bytes = sum(int(w.size) * w.dtype.itemsize for w in weight_args)
    vmem_need = (2 * t_block * B_pad * z_dim * x_item
                 + 2 * t_block * B_pad * H_pad * out_item
                 + t_block * B_pad * H_pad * 4
                 + num_layers * B_pad * H_pad * 4
                 + n_weight_bytes) + (2 << 20)
    vmem_limit = int(min(max(vmem_need, 16 << 20), vmem_budget))

    # Cost estimate: this kernel is serial/latency-bound, far more expensive
    # than its byte count suggests — tell XLA so it schedules around it.
    flops = int(2 * T_pad * B_pad * (z_dim * H_pad
                                     + (num_layers - 1) * H_pad * H_pad
                                     + num_layers * H_pad * H_pad
                                     + H_pad * H_pad))
    transcendentals = int(T_pad * num_layers * B_pad * H_pad)
    bytes_accessed = int(x_flat.size * x_item
                         + T_pad * B_pad * H_pad * out_item
                         + n_weight_bytes)

    out_flat = pl.pallas_call(
        kernel,
        out_shape=jax.ShapeDtypeStruct((T_pad * B_pad, H_pad), x.dtype),
        grid_spec=pltpu.PrefetchScalarGridSpec(
            num_scalar_prefetch=0,
            grid=(n_blocks,),
            in_specs=[pl.BlockSpec((t_block * B_pad, z_dim), lambda t: (t, 0))]
                     + weight_specs,
            out_specs=pl.BlockSpec((t_block * B_pad, H_pad), lambda t: (t, 0)),
            scratch_shapes=[
                pltpu.VMEM((num_layers, B_pad, H_pad), jnp.float32),   # h carry
                pltpu.VMEM((t_block * B_pad, H_pad), jnp.float32),     # act slab
            ],
        ),
        compiler_params=pltpu.CompilerParams(
            dimension_semantics=("arbitrary",),   # sequential: hidden-state carry
            vmem_limit_bytes=vmem_limit,
        ),
        cost_estimate=pl.CostEstimate(flops=flops,
                                      transcendentals=transcendentals,
                                      bytes_accessed=bytes_accessed),
    )(x_flat, *weight_args)

    return out_flat.reshape(T_pad, B_pad, H_pad)[:seq_len, :batch, :H]


def init_params(key, *, z_dim, hidden_dim, num_layers):
    """Init mirroring nn.RNN / nn.Linear shapes (uniform +/- 1/sqrt(H)).

    All weights stored pre-transposed as (in_features, out_features)."""
    H = hidden_dim
    bound = 1.0 / jnp.sqrt(jnp.float32(H))
    layers = []
    for l in range(num_layers):
        in_dim = z_dim if l == 0 else H
        key, k1, k2, k3, k4 = jax.random.split(key, 5)
        w_ih = jax.random.uniform(k1, (in_dim, H), jnp.float32, -bound, bound)
        w_hh = jax.random.uniform(k2, (H, H), jnp.float32, -bound, bound)
        b_ih = jax.random.uniform(k3, (1, H), jnp.float32, -bound, bound)
        b_hh = jax.random.uniform(k4, (1, H), jnp.float32, -bound, bound)
        layers.append((w_ih, w_hh, b_ih + b_hh))   # biases fused (they only add)
    key, k1, k2 = jax.random.split(key, 3)
    w_fc = jax.random.uniform(k1, (H, H), jnp.float32, -bound, bound)
    b_fc = jax.random.uniform(k2, (1, H), jnp.float32, -bound, bound)
    return {"layers": layers, "fc": (w_fc, b_fc)}


def reference_forward(x, params, *, num_layers, hidden_dim):
    """Pure-JAX f32 reference matching PyTorch nn.RNN(tanh) + nn.Linear."""
    seq_len, batch, _ = x.shape
    H = hidden_dim
    h = [jnp.zeros((batch, H), jnp.float32) for _ in range(num_layers)]
    w_fc, b_fc = params["fc"]
    outs = []
    for t in range(seq_len):
        inp = x[t]
        for l in range(num_layers):
            w_ih, w_hh, b = params["layers"][l]
            h[l] = jnp.tanh(inp @ w_ih + h[l] @ w_hh + b)
            inp = h[l]
        outs.append(inp @ w_fc + b_fc)
    return jnp.stack(outs, axis=0)


if __name__ == "__main__":
    # Small config consistent with the module's args: z_dim, hidden_dim, num_layer.
    SEQ, BATCH = 8, 4
    Z_DIM, HIDDEN, NUM_LAYERS = 16, 32, 2

    key = jax.random.PRNGKey(0)
    k_x, k_p = jax.random.split(key)
    x = jax.random.normal(k_x, (SEQ, BATCH, Z_DIM), jnp.float32)
    params = init_params(k_p, z_dim=Z_DIM, hidden_dim=HIDDEN, num_layers=NUM_LAYERS)

    run = functools.partial(encoder_forward, num_layers=NUM_LAYERS,
                            hidden_dim=HIDDEN)
    y = jax.block_until_ready(run(x, params))

    y_ref = reference_forward(x, params, num_layers=NUM_LAYERS, hidden_dim=HIDDEN)
    assert y.shape == (SEQ, BATCH, HIDDEN)
    # Tolerance loosened vs the f32 reference: kernel uses bf16 matmul weights
    # with f32 accumulation (worst-case drift ~1e-2 through the recurrence).
    assert jnp.allclose(y, y_ref, atol=5e-2, rtol=5e-2)

    print("KERNEL_OK")
</pallas_src>

<mosaic_0001>
module attributes {stable_mosaic.version = 11 : i64} {
  func.func @kernel(%arg0: i32, %arg1: memref<64x16xf32, #tpu.memory_space<vmem>>, %arg2: memref<16x128xbf16, #tpu.memory_space<vmem>>, %arg3: memref<128x128xbf16, #tpu.memory_space<vmem>>, %arg4: memref<1x128xf32, #tpu.memory_space<vmem>>, %arg5: memref<128x128xbf16, #tpu.memory_space<vmem>>, %arg6: memref<128x128xbf16, #tpu.memory_space<vmem>>, %arg7: memref<1x128xf32, #tpu.memory_space<vmem>>, %arg8: memref<128x128xbf16, #tpu.memory_space<vmem>>, %arg9: memref<1x128xf32, #tpu.memory_space<vmem>>, %arg10: memref<64x128xf32, #tpu.memory_space<vmem>>, %arg11: memref<2x8x128xf32, #tpu.memory_space<vmem>>, %arg12: memref<64x128xf32, #tpu.memory_space<vmem>>) attributes {dimension_semantics = [#tpu.dimension_semantics<arbitrary>], iteration_bounds = array<i64: 1>, scalar_prefetch = 0 : i64, scratch_operands = 2 : i64, tpu.core_type = #tpu.core_type<tc>, window_params = [{transform_indices = @transform_0, window_bounds = array<i64: 64, 16>}, {pipeline_mode = #tpu.pipeline_mode<synchronous>, transform_indices = @transform_1, window_bounds = array<i64: 16, 128>}, {pipeline_mode = #tpu.pipeline_mode<synchronous>, transform_indices = @transform_2, window_bounds = array<i64: 128, 128>}, {pipeline_mode = #tpu.pipeline_mode<synchronous>, transform_indices = @transform_3, window_bounds = array<i64: 1, 128>}, {pipeline_mode = #tpu.pipeline_mode<synchronous>, transform_indices = @transform_4, window_bounds = array<i64: 128, 128>}, {pipeline_mode = #tpu.pipeline_mode<synchronous>, transform_indices = @transform_5, window_bounds = array<i64: 128, 128>}, {pipeline_mode = #tpu.pipeline_mode<synchronous>, transform_indices = @transform_6, window_bounds = array<i64: 1, 128>}, {pipeline_mode = #tpu.pipeline_mode<synchronous>, transform_indices = @transform_7, window_bounds = array<i64: 128, 128>}, {pipeline_mode = #tpu.pipeline_mode<synchronous>, transform_indices = @transform_8, window_bounds = array<i64: 1, 128>}, {transform_indices = @transform_9, window_bounds = array<i64: 64, 128>}]} {
    %c0_i32 = arith.constant 0 : i32
    %0 = arith.cmpi eq, %arg0, %c0_i32 : i32
    %1 = arith.extui %0 : i1 to i32
    %c0_i32_0 = arith.constant 0 : i32
    %2 = arith.cmpi ne, %1, %c0_i32_0 : i32
    scf.if %2 {
      %cst_115 = arith.constant 0.000000e+00 : f32
      %199 = vector.broadcast %cst_115 : f32 to vector<2x8x128xf32>
      %c0_116 = arith.constant 0 : index
      %c0_117 = arith.constant 0 : index
      %c0_118 = arith.constant 0 : index
      %200 = vector.load %arg11[%c0_116, %c0_117, %c0_118] : memref<2x8x128xf32, #tpu.memory_space<vmem>>, vector<2x8x128xf32>
      tpu.vector_store %arg11[%c0_116, %c0_117, %c0_118], %199 {strides = array<i32>} : memref<2x8x128xf32, #tpu.memory_space<vmem>>, vector<2x8x128xf32>,
    } else {
    }
    %c0 = arith.constant 0 : index
    %c0_1 = arith.constant 0 : index
    %3 = vector.load %arg2[%c0, %c0_1] : memref<16x128xbf16, #tpu.memory_space<vmem>>, vector<16x128xbf16>
    %c0_2 = arith.constant 0 : index
    %c0_3 = arith.constant 0 : index
    %4 = vector.load %arg3[%c0_2, %c0_3] : memref<128x128xbf16, #tpu.memory_space<vmem>>, vector<128x128xbf16>
    %c0_4 = arith.constant 0 : index
    %c0_5 = arith.constant 0 : index
    %5 = vector.load %arg4[%c0_4, %c0_5] : memref<1x128xf32, #tpu.memory_space<vmem>>, vector<1x128xf32>
    %c0_6 = arith.constant 0 : index
    %c0_7 = arith.constant 0 : index
    %6 = vector.load %arg1[%c0_6, %c0_7] : memref<64x16xf32, #tpu.memory_space<vmem>>, vector<64x16xf32>
    %7 = arith.truncf %6 : vector<64x16xf32> to vector<64x16xbf16>
    %cst = arith.constant dense<0.000000e+00> : vector<64x128xf32>
    %8 = tpu.matmul %7, %3, %cst {dimension_numbers = #tpu.dot_dimension_numbers<[1], [0], [0], [1], [0, 0, 1, 1], [], []>} : vector<64x16xbf16>, vector<16x128xbf16>, vector<64x128xf32> -> vector<64x128xf32>
    %9 = vector.broadcast %5 : vector<1x128xf32> to vector<64x128xf32>
    %10 = arith.addf %8, %9 : vector<64x128xf32>
    %c0_8 = arith.constant 0 : index
    %c0_9 = arith.constant 0 : index
    %11 = vector.load %arg12[%c0_8, %c0_9] : memref<64x128xf32, #tpu.memory_space<vmem>>, vector<64x128xf32>
    tpu.vector_store %arg12[%c0_8, %c0_9], %10 {strides = array<i32>} : memref<64x128xf32, #tpu.memory_space<vmem>>, vector<64x128xf32>,
    %c0_10 = arith.constant 0 : index
    %c0_11 = arith.constant 0 : index
    %c0_12 = arith.constant 0 : index
    %12 = vector.load %arg11[%c0_10, %c0_11, %c0_12] : memref<2x8x128xf32, #tpu.memory_space<vmem>>, vector<1x8x128xf32>
    %13 = vector.shape_cast %12 : vector<1x8x128xf32> to vector<8x128xf32>
    %c0_i32_13 = arith.constant 0 : i32
    %c8_i32 = arith.constant 8 : i32
    %14 = arith.muli %c0_i32_13, %c8_i32 : i32
    %15 = tpu.assume_multiple %14, 8 : i32
    %16 = arith.index_cast %15 : i32 to index
    %c0_14 = arith.constant 0 : index
    %17 = vector.load %arg12[%16, %c0_14] : memref<64x128xf32, #tpu.memory_space<vmem>>, vector<8x128xf32>
    %18 = arith.truncf %13 : vector<8x128xf32> to vector<8x128xbf16>
    %cst_15 = arith.constant dense<0.000000e+00> : vector<8x128xf32>
    %19 = tpu.matmul %18, %4, %cst_15 {dimension_numbers = #tpu.dot_dimension_numbers<[1], [0], [0], [1], [0, 0, 1, 1], [], []>} : vector<8x128xbf16>, vector<128x128xbf16>, vector<8x128xf32> -> vector<8x128xf32>
    %20 = arith.addf %17, %19 : vector<8x128xf32>
    %21 = math.tanh %20 : vector<8x128xf32>
    %22 = arith.index_cast %15 : i32 to index
    %c0_16 = arith.constant 0 : index
    %23 = vector.load %arg12[%22, %c0_16] : memref<64x128xf32, #tpu.memory_space<vmem>>, vector<8x128xf32>
    tpu.vector_store %arg12[%22, %c0_16], %21 {strides = array<i32>} : memref<64x128xf32, #tpu.memory_space<vmem>>, vector<8x128xf32>,
    %c1_i32 = arith.constant 1 : i32
    %c8_i32_17 = arith.constant 8 : i32
    %24 = arith.muli %c1_i32, %c8_i32_17 : i32
    %25 = tpu.assume_multiple %24, 8 : i32
    %26 = arith.index_cast %25 : i32 to index
    %c0_18 = arith.constant 0 : index
    %27 = vector.load %arg12[%26, %c0_18] : memref<64x128xf32, #tpu.memory_space<vmem>>, vector<8x128xf32>
    %28 = arith.truncf %21 : vector<8x128xf32> to vector<8x128xbf16>
    %cst_19 = arith.constant dense<0.000000e+00> : vector<8x128xf32>
    %29 = tpu.matmul %28, %4, %cst_19 {dimension_numbers = #tpu.dot_dimension_numbers<[1], [0], [0], [1], [0, 0, 1, 1], [], []>} : vector<8x128xbf16>, vector<128x128xbf16>, vector<8x128xf32> -> vector<8x128xf32>
    %30 = arith.addf %27, %29 : vector<8x128xf32>
    %31 = math.tanh %30 : vector<8x128xf32>
    %32 = arith.index_cast %25 : i32 to index
    %c0_20 = arith.constant 0 : index
    %33 = vector.load %arg12[%32, %c0_20] : memref<64x128xf32, #tpu.memory_space<vmem>>, vector<8x128xf32>
    tpu.vector_store %arg12[%32, %c0_20], %31 {strides = array<i32>} : memref<64x128xf32, #tpu.memory_space<vmem>>, vector<8x128xf32>,
    %c2_i32 = arith.constant 2 : i32
    %c8_i32_21 = arith.constant 8 : i32
    %34 = arith.muli %c2_i32, %c8_i32_21 : i32
    %35 = tpu.assume_multiple %34, 8 : i32
    %36 = arith.index_cast %35 : i32 to index
    %c0_22 = arith.constant 0 : index
    %37 = vector.load %arg12[%36, %c0_22] : memref<64x128xf32, #tpu.memory_space<vmem>>, vector<8x128xf32>
    %38 = arith.truncf %31 : vector<8x128xf32> to vector<8x128xbf16>
    %cst_23 = arith.constant dense<0.000000e+00> : vector<8x128xf32>
    %39 = tpu.matmul %38, %4, %cst_23 {dimension_numbers = #tpu.dot_dimension_numbers<[1], [0], [0], [1], [0, 0, 1, 1], [], []>} : vector<8x128xbf16>, vector<128x128xbf16>, vector<8x128xf32> -> vector<8x128xf32>
    %40 = arith.addf %37, %39 : vector<8x128xf32>
    %41 = math.tanh %40 : vector<8x128xf32>
    %42 = arith.index_cast %35 : i32 to index
    %c0_24 = arith.constant 0 : index
    %43 = vector.load %arg12[%42, %c0_24] : memref<64x128xf32, #tpu.memory_space<vmem>>, vector<8x128xf32>
    tpu.vector_store %arg12[%42, %c0_24], %41 {strides = array<i32>} : memref<64x128xf32, #tpu.memory_space<vmem>>, vector<8x128xf32>,
    %c3_i32 = arith.constant 3 : i32
    %c8_i32_25 = arith.constant 8 : i32
    %44 = arith.muli %c3_i32, %c8_i32_25 : i32
    %45 = tpu.assume_multiple %44, 8 : i32
    %46 = arith.index_cast %45 : i32 to index
    %c0_26 = arith.constant 0 : index
    %47 = vector.load %arg12[%46, %c0_26] : memref<64x128xf32, #tpu.memory_space<vmem>>, vector<8x128xf32>
    %48 = arith.truncf %41 : vector<8x128xf32> to vector<8x128xbf16>
    %cst_27 = arith.constant dense<0.000000e+00> : vector<8x128xf32>
    %49 = tpu.matmul %48, %4, %cst_27 {dimension_numbers = #tpu.dot_dimension_numbers<[1], [0], [0], [1], [0, 0, 1, 1], [], []>} : vector<8x128xbf16>, vector<128x128xbf16>, vector<8x128xf32> -> vector<8x128xf32>
    %50 = arith.addf %47, %49 : vector<8x128xf32>
    %51 = math.tanh %50 : vector<8x128xf32>
    %52 = arith.index_cast %45 : i32 to index
    %c0_28 = arith.constant 0 : index
    %53 = vector.load %arg12[%52, %c0_28] : memref<64x128xf32, #tpu.memory_space<vmem>>, vector<8x128xf32>
    tpu.vector_store %arg12[%52, %c0_28], %51 {strides = array<i32>} : memref<64x128xf32, #tpu.memory_space<vmem>>, vector<8x128xf32>,
    %c4_i32 = arith.constant 4 : i32
    %c8_i32_29 = arith.constant 8 : i32
    %54 = arith.muli %c4_i32, %c8_i32_29 : i32
    %55 = tpu.assume_multiple %54, 8 : i32
    %56 = arith.index_cast %55 : i32 to index
    %c0_30 = arith.constant 0 : index
    %57 = vector.load %arg12[%56, %c0_30] : memref<64x128xf32, #tpu.memory_space<vmem>>, vector<8x128xf32>
    %58 = arith.truncf %51 : vector<8x128xf32> to vector<8x128xbf16>
    %cst_31 = arith.constant dense<0.000000e+00> : vector<8x128xf32>
    %59 = tpu.matmul %58, %4, %cst_31 {dimension_numbers = #tpu.dot_dimension_numbers<[1], [0], [0], [1], [0, 0, 1, 1], [], []>} : vector<8x128xbf16>, vector<128x128xbf16>, vector<8x128xf32> -> vector<8x128xf32>
    %60 = arith.addf %57, %59 : vector<8x128xf32>
    %61 = math.tanh %60 : vector<8x128xf32>
    %62 = arith.index_cast %55 : i32 to index
    %c0_32 = arith.constant 0 : index
    %63 = vector.load %arg12[%62, %c0_32] : memref<64x128xf32, #tpu.memory_space<vmem>>, vector<8x128xf32>
    tpu.vector_store %arg12[%62, %c0_32], %61 {strides = array<i32>} : memref<64x128xf32, #tpu.memory_space<vmem>>, vector<8x128xf32>,
    %c5_i32 = arith.constant 5 : i32
    %c8_i32_33 = arith.constant 8 : i32
    %64 = arith.muli %c5_i32, %c8_i32_33 : i32
    %65 = tpu.assume_multiple %64, 8 : i32
    %66 = arith.index_cast %65 : i32 to index
    %c0_34 = arith.constant 0 : index
    %67 = vector.load %arg12[%66, %c0_34] : memref<64x128xf32, #tpu.memory_space<vmem>>, vector<8x128xf32>
    %68 = arith.truncf %61 : vector<8x128xf32> to vector<8x128xbf16>
    %cst_35 = arith.constant dense<0.000000e+00> : vector<8x128xf32>
    %69 = tpu.matmul %68, %4, %cst_35 {dimension_numbers = #tpu.dot_dimension_numbers<[1], [0], [0], [1], [0, 0, 1, 1], [], []>} : vector<8x128xbf16>, vector<128x128xbf16>, vector<8x128xf32> -> vector<8x128xf32>
    %70 = arith.addf %67, %69 : vector<8x128xf32>
    %71 = math.tanh %70 : vector<8x128xf32>
    %72 = arith.index_cast %65 : i32 to index
    %c0_36 = arith.constant 0 : index
    %73 = vector.load %arg12[%72, %c0_36] : memref<64x128xf32, #tpu.memory_space<vmem>>, vector<8x128xf32>
    tpu.vector_store %arg12[%72, %c0_36], %71 {strides = array<i32>} : memref<64x128xf32, #tpu.memory_space<vmem>>, vector<8x128xf32>,
    %c6_i32 = arith.constant 6 : i32
    %c8_i32_37 = arith.constant 8 : i32
    %74 = arith.muli %c6_i32, %c8_i32_37 : i32
    %75 = tpu.assume_multiple %74, 8 : i32
    %76 = arith.index_cast %75 : i32 to index
    %c0_38 = arith.constant 0 : index
    %77 = vector.load %arg12[%76, %c0_38] : memref<64x128xf32, #tpu.memory_space<vmem>>, vector<8x128xf32>
    %78 = arith.truncf %71 : vector<8x128xf32> to vector<8x128xbf16>
    %cst_39 = arith.constant dense<0.000000e+00> : vector<8x128xf32>
    %79 = tpu.matmul %78, %4, %cst_39 {dimension_numbers = #tpu.dot_dimension_numbers<[1], [0], [0], [1], [0, 0, 1, 1], [], []>} : vector<8x128xbf16>, vector<128x128xbf16>, vector<8x128xf32> -> vector<8x128xf32>
    %80 = arith.addf %77, %79 : vector<8x128xf32>
    %81 = math.tanh %80 : vector<8x128xf32>
    %82 = arith.index_cast %75 : i32 to index
    %c0_40 = arith.constant 0 : index
    %83 = vector.load %arg12[%82, %c0_40] : memref<64x128xf32, #tpu.memory_space<vmem>>, vector<8x128xf32>
    tpu.vector_store %arg12[%82, %c0_40], %81 {strides = array<i32>} : memref<64x128xf32, #tpu.memory_space<vmem>>, vector<8x128xf32>,
    %c7_i32 = arith.constant 7 : i32
    %c8_i32_41 = arith.constant 8 : i32
    %84 = arith.muli %c7_i32, %c8_i32_41 : i32
    %85 = tpu.assume_multiple %84, 8 : i32
    %86 = arith.index_cast %85 : i32 to index
    %c0_42 = arith.constant 0 : index
    %87 = vector.load %arg12[%86, %c0_42] : memref<64x128xf32, #tpu.memory_space<vmem>>, vector<8x128xf32>
    %88 = arith.truncf %81 : vector<8x128xf32> to vector<8x128xbf16>
    %cst_43 = arith.constant dense<0.000000e+00> : vector<8x128xf32>
    %89 = tpu.matmul %88, %4, %cst_43 {dimension_numbers = #tpu.dot_dimension_numbers<[1], [0], [0], [1], [0, 0, 1, 1], [], []>} : vector<8x128xbf16>, vector<128x128xbf16>, vector<8x128xf32> -> vector<8x128xf32>
    %90 = arith.addf %87, %89 : vector<8x128xf32>
    %91 = math.tanh %90 : vector<8x128xf32>
    %92 = arith.index_cast %85 : i32 to index
    %c0_44 = arith.constant 0 : index
    %93 = vector.load %arg12[%92, %c0_44] : memref<64x128xf32, #tpu.memory_space<vmem>>, vector<8x128xf32>
    tpu.vector_store %arg12[%92, %c0_44], %91 {strides = array<i32>} : memref<64x128xf32, #tpu.memory_space<vmem>>, vector<8x128xf32>,
    %c8_i32_45 = arith.constant 8 : i32
    %c0_46 = arith.constant 0 : index
    %c0_47 = arith.constant 0 : index
    %c0_48 = arith.constant 0 : index
    %94 = vector.load %arg11[%c0_46, %c0_47, %c0_48] : memref<2x8x128xf32, #tpu.memory_space<vmem>>, vector<1x8x128xf32>
    %95 = vector.shape_cast %94 : vector<1x8x128xf32> to vector<8x128xf32>
    %96 = vector.shape_cast %91 : vector<8x128xf32> to vector<1x8x128xf32>
    tpu.vector_store %arg11[%c0_46, %c0_47, %c0_48], %96 {strides = array<i32>} : memref<2x8x128xf32, #tpu.memory_space<vmem>>, vector<1x8x128xf32>,
    %c0_49 = arith.constant 0 : index
    %c0_50 = arith.constant 0 : index
    %97 = vector.load %arg5[%c0_49, %c0_50] : memref<128x128xbf16, #tpu.memory_space<vmem>>, vector<128x128xbf16>
    %c0_51 = arith.constant 0 : index
    %c0_52 = arith.constant 0 : index
    %98 = vector.load %arg6[%c0_51, %c0_52] : memref<128x128xbf16, #tpu.memory_space<vmem>>, vector<128x128xbf16>
    %c0_53 = arith.constant 0 : index
    %c0_54 = arith.constant 0 : index
    %99 = vector.load %arg7[%c0_53, %c0_54] : memref<1x128xf32, #tpu.memory_space<vmem>>, vector<1x128xf32>
    %c0_55 = arith.constant 0 : index
    %c0_56 = arith.constant 0 : index
    %100 = vector.load %arg12[%c0_55, %c0_56] : memref<64x128xf32, #tpu.memory_space<vmem>>, vector<64x128xf32>
    %101 = arith.truncf %100 : vector<64x128xf32> to vector<64x128xbf16>
    %cst_57 = arith.constant dense<0.000000e+00> : vector<64x128xf32>
    %102 = tpu.matmul %101, %97, %cst_57 {dimension_numbers = #tpu.dot_dimension_numbers<[1], [0], [0], [1], [0, 0, 1, 1], [], []>} : vector<64x128xbf16>, vector<128x128xbf16>, vector<64x128xf32> -> vector<64x128xf32>
    %103 = vector.broadcast %99 : vector<1x128xf32> to vector<64x128xf32>
    %104 = arith.addf %102, %103 : vector<64x128xf32>
    %c0_58 = arith.constant 0 : index
    %c0_59 = arith.constant 0 : index
    %105 = vector.load %arg12[%c0_58, %c0_59] : memref<64x128xf32, #tpu.memory_space<vmem>>, vector<64x128xf32>
    tpu.vector_store %arg12[%c0_58, %c0_59], %104 {strides = array<i32>} : memref<64x128xf32, #tpu.memory_space<vmem>>, vector<64x128xf32>,
    %c1 = arith.constant 1 : index
    %c0_60 = arith.constant 0 : index
    %c0_61 = arith.constant 0 : index
    %106 = vector.load %arg11[%c1, %c0_60, %c0_61] : memref<2x8x128xf32, #tpu.memory_space<vmem>>, vector<1x8x128xf32>
    %107 = vector.shape_cast %106 : vector<1x8x128xf32> to vector<8x128xf32>
    %c0_i32_62 = arith.constant 0 : i32
    %c8_i32_63 = arith.constant 8 : i32
    %108 = arith.muli %c0_i32_62, %c8_i32_63 : i32
    %109 = tpu.assume_multiple %108, 8 : i32
    %110 = arith.index_cast %109 : i32 to index
    %c0_64 = arith.constant 0 : index
    %111 = vector.load %arg12[%110, %c0_64] : memref<64x128xf32, #tpu.memory_space<vmem>>, vector<8x128xf32>
    %112 = arith.truncf %107 : vector<8x128xf32> to vector<8x128xbf16>
    %cst_65 = arith.constant dense<0.000000e+00> : vector<8x128xf32>
    %113 = tpu.matmul %112, %98, %cst_65 {dimension_numbers = #tpu.dot_dimension_numbers<[1], [0], [0], [1], [0, 0, 1, 1], [], []>} : vector<8x128xbf16>, vector<128x128xbf16>, vector<8x128xf32> -> vector<8x128xf32>
    %114 = arith.addf %111, %113 : vector<8x128xf32>
    %115 = math.tanh %114 : vector<8x128xf32>
    %116 = arith.index_cast %109 : i32 to index
    %c0_66 = arith.constant 0 : index
    %117 = vector.load %arg12[%116, %c0_66] : memref<64x128xf32, #tpu.memory_space<vmem>>, vector<8x128xf32>
    tpu.vector_store %arg12[%116, %c0_66], %115 {strides = array<i32>} : memref<64x128xf32, #tpu.memory_space<vmem>>, vector<8x128xf32>,
    %c1_i32_67 = arith.constant 1 : i32
    %c8_i32_68 = arith.constant 8 : i32
    %118 = arith.muli %c1_i32_67, %c8_i32_68 : i32
    %119 = tpu.assume_multiple %118, 8 : i32
    %120 = arith.index_cast %119 : i32 to index
    %c0_69 = arith.constant 0 : index
    %121 = vector.load %arg12[%120, %c0_69] : memref<64x128xf32, #tpu.memory_space<vmem>>, vector<8x128xf32>
    %122 = arith.truncf %115 : vector<8x128xf32> to vector<8x128xbf16>
    %cst_70 = arith.constant dense<0.000000e+00> : vector<8x128xf32>
    %123 = tpu.matmul %122, %98, %cst_70 {dimension_numbers = #tpu.dot_dimension_numbers<[1], [0], [0], [1], [0, 0, 1, 1], [], []>} : vector<8x128xbf16>, vector<128x128xbf16>, vector<8x128xf32> -> vector<8x128xf32>
    %124 = arith.addf %121, %123 : vector<8x128xf32>
    %125 = math.tanh %124 : vector<8x128xf32>
    %126 = arith.index_cast %119 : i32 to index
    %c0_71 = arith.constant 0 : index
    %127 = vector.load %arg12[%126, %c0_71] : memref<64x128xf32, #tpu.memory_space<vmem>>, vector<8x128xf32>
    tpu.vector_store %arg12[%126, %c0_71], %125 {strides = array<i32>} : memref<64x128xf32, #tpu.memory_space<vmem>>, vector<8x128xf32>,
    %c2_i32_72 = arith.constant 2 : i32
    %c8_i32_73 = arith.constant 8 : i32
    %128 = arith.muli %c2_i32_72, %c8_i32_73 : i32
    %129 = tpu.assume_multiple %128, 8 : i32
    %130 = arith.index_cast %129 : i32 to index
    %c0_74 = arith.constant 0 : index
    %131 = vector.load %arg12[%130, %c0_74] : memref<64x128xf32, #tpu.memory_space<vmem>>, vector<8x128xf32>
    %132 = arith.truncf %125 : vector<8x128xf32> to vector<8x128xbf16>
    %cst_75 = arith.constant dense<0.000000e+00> : vector<8x128xf32>
    %133 = tpu.matmul %132, %98, %cst_75 {dimension_numbers = #tpu.dot_dimension_numbers<[1], [0], [0], [1], [0, 0, 1, 1], [], []>} : vector<8x128xbf16>, vector<128x128xbf16>, vector<8x128xf32> -> vector<8x128xf32>
    %134 = arith.addf %131, %133 : vector<8x128xf32>
    %135 = math.tanh %134 : vector<8x128xf32>
    %136 = arith.index_cast %129 : i32 to index
    %c0_76 = arith.constant 0 : index
    %137 = vector.load %arg12[%136, %c0_76] : memref<64x128xf32, #tpu.memory_space<vmem>>, vector<8x128xf32>
    tpu.vector_store %arg12[%136, %c0_76], %135 {strides = array<i32>} : memref<64x128xf32, #tpu.memory_space<vmem>>, vector<8x128xf32>,
    %c3_i32_77 = arith.constant 3 : i32
    %c8_i32_78 = arith.constant 8 : i32
    %138 = arith.muli %c3_i32_77, %c8_i32_78 : i32
    %139 = tpu.assume_multiple %138, 8 : i32
    %140 = arith.index_cast %139 : i32 to index
    %c0_79 = arith.constant 0 : index
    %141 = vector.load %arg12[%140, %c0_79] : memref<64x128xf32, #tpu.memory_space<vmem>>, vector<8x128xf32>
    %142 = arith.truncf %135 : vector<8x128xf32> to vector<8x128xbf16>
    %cst_80 = arith.constant dense<0.000000e+00> : vector<8x128xf32>
    %143 = tpu.matmul %142, %98, %cst_80 {dimension_numbers = #tpu.dot_dimension_numbers<[1], [0], [0], [1], [0, 0, 1, 1], [], []>} : vector<8x128xbf16>, vector<128x128xbf16>, vector<8x128xf32> -> vector<8x128xf32>
    %144 = arith.addf %141, %143 : vector<8x128xf32>
    %145 = math.tanh %144 : vector<8x128xf32>
    %146 = arith.index_cast %139 : i32 to index
    %c0_81 = arith.constant 0 : index
    %147 = vector.load %arg12[%146, %c0_81] : memref<64x128xf32, #tpu.memory_space<vmem>>, vector<8x128xf32>
    tpu.vector_store %arg12[%146, %c0_81], %145 {strides = array<i32>} : memref<64x128xf32, #tpu.memory_space<vmem>>, vector<8x128xf32>,
    %c4_i32_82 = arith.constant 4 : i32
    %c8_i32_83 = arith.constant 8 : i32
    %148 = arith.muli %c4_i32_82, %c8_i32_83 : i32
    %149 = tpu.assume_multiple %148, 8 : i32
    %150 = arith.index_cast %149 : i32 to index
    %c0_84 = arith.constant 0 : index
    %151 = vector.load %arg12[%150, %c0_84] : memref<64x128xf32, #tpu.memory_space<vmem>>, vector<8x128xf32>
    %152 = arith.truncf %145 : vector<8x128xf32> to vector<8x128xbf16>
    %cst_85 = arith.constant dense<0.000000e+00> : vector<8x128xf32>
    %153 = tpu.matmul %152, %98, %cst_85 {dimension_numbers = #tpu.dot_dimension_numbers<[1], [0], [0], [1], [0, 0, 1, 1], [], []>} : vector<8x128xbf16>, vector<128x128xbf16>, vector<8x128xf32> -> vector<8x128xf32>
    %154 = arith.addf %151, %153 : vector<8x128xf32>
    %155 = math.tanh %154 : vector<8x128xf32>
    %156 = arith.index_cast %149 : i32 to index
    %c0_86 = arith.constant 0 : index
    %157 = vector.load %arg12[%156, %c0_86] : memref<64x128xf32, #tpu.memory_space<vmem>>, vector<8x128xf32>
    tpu.vector_store %arg12[%156, %c0_86], %155 {strides = array<i32>} : memref<64x128xf32, #tpu.memory_space<vmem>>, vector<8x128xf32>,
    %c5_i32_87 = arith.constant 5 : i32
    %c8_i32_88 = arith.constant 8 : i32
    %158 = arith.muli %c5_i32_87, %c8_i32_88 : i32
    %159 = tpu.assume_multiple %158, 8 : i32
    %160 = arith.index_cast %159 : i32 to index
    %c0_89 = arith.constant 0 : index
    %161 = vector.load %arg12[%160, %c0_89] : memref<64x128xf32, #tpu.memory_space<vmem>>, vector<8x128xf32>
    %162 = arith.truncf %155 : vector<8x128xf32> to vector<8x128xbf16>
    %cst_90 = arith.constant dense<0.000000e+00> : vector<8x128xf32>
    %163 = tpu.matmul %162, %98, %cst_90 {dimension_numbers = #tpu.dot_dimension_numbers<[1], [0], [0], [1], [0, 0, 1, 1], [], []>} : vector<8x128xbf16>, vector<128x128xbf16>, vector<8x128xf32> -> vector<8x128xf32>
    %164 = arith.addf %161, %163 : vector<8x128xf32>
    %165 = math.tanh %164 : vector<8x128xf32>
    %166 = arith.index_cast %159 : i32 to index
    %c0_91 = arith.constant 0 : index
    %167 = vector.load %arg12[%166, %c0_91] : memref<64x128xf32, #tpu.memory_space<vmem>>, vector<8x128xf32>
    tpu.vector_store %arg12[%166, %c0_91], %165 {strides = array<i32>} : memref<64x128xf32, #tpu.memory_space<vmem>>, vector<8x128xf32>,
    %c6_i32_92 = arith.constant 6 : i32
    %c8_i32_93 = arith.constant 8 : i32
    %168 = arith.muli %c6_i32_92, %c8_i32_93 : i32
    %169 = tpu.assume_multiple %168, 8 : i32
    %170 = arith.index_cast %169 : i32 to index
    %c0_94 = arith.constant 0 : index
    %171 = vector.load %arg12[%170, %c0_94] : memref<64x128xf32, #tpu.memory_space<vmem>>, vector<8x128xf32>
    %172 = arith.truncf %165 : vector<8x128xf32> to vector<8x128xbf16>
    %cst_95 = arith.constant dense<0.000000e+00> : vector<8x128xf32>
    %173 = tpu.matmul %172, %98, %cst_95 {dimension_numbers = #tpu.dot_dimension_numbers<[1], [0], [0], [1], [0, 0, 1, 1], [], []>} : vector<8x128xbf16>, vector<128x128xbf16>, vector<8x128xf32> -> vector<8x128xf32>
    %174 = arith.addf %171, %173 : vector<8x128xf32>
    %175 = math.tanh %174 : vector<8x128xf32>
    %176 = arith.index_cast %169 : i32 to index
    %c0_96 = arith.constant 0 : index
    %177 = vector.load %arg12[%176, %c0_96] : memref<64x128xf32, #tpu.memory_space<vmem>>, vector<8x128xf32>
    tpu.vector_store %arg12[%176, %c0_96], %175 {strides = array<i32>} : memref<64x128xf32, #tpu.memory_space<vmem>>, vector<8x128xf32>,
    %c7_i32_97 = arith.constant 7 : i32
    %c8_i32_98 = arith.constant 8 : i32
    %178 = arith.muli %c7_i32_97, %c8_i32_98 : i32
    %179 = tpu.assume_multiple %178, 8 : i32
    %180 = arith.index_cast %179 : i32 to index
    %c0_99 = arith.constant 0 : index
    %181 = vector.load %arg12[%180, %c0_99] : memref<64x128xf32, #tpu.memory_space<vmem>>, vector<8x128xf32>
    %182 = arith.truncf %175 : vector<8x128xf32> to vector<8x128xbf16>
    %cst_100 = arith.constant dense<0.000000e+00> : vector<8x128xf32>
    %183 = tpu.matmul %182, %98, %cst_100 {dimension_numbers = #tpu.dot_dimension_numbers<[1], [0], [0], [1], [0, 0, 1, 1], [], []>} : vector<8x128xbf16>, vector<128x128xbf16>, vector<8x128xf32> -> vector<8x128xf32>
    %184 = arith.addf %181, %183 : vector<8x128xf32>
    %185 = math.tanh %184 : vector<8x128xf32>
    %186 = arith.index_cast %179 : i32 to index
    %c0_101 = arith.constant 0 : index
    %187 = vector.load %arg12[%186, %c0_101] : memref<64x128xf32, #tpu.memory_space<vmem>>, vector<8x128xf32>
    tpu.vector_store %arg12[%186, %c0_101], %185 {strides = array<i32>} : memref<64x128xf32, #tpu.memory_space<vmem>>, vector<8x128xf32>,
    %c8_i32_102 = arith.constant 8 : i32
    %c1_103 = arith.constant 1 : index
    %c0_104 = arith.constant 0 : index
    %c0_105 = arith.constant 0 : index
    %188 = vector.load %arg11[%c1_103, %c0_104, %c0_105] : memref<2x8x128xf32, #tpu.memory_space<vmem>>, vector<1x8x128xf32>
    %189 = vector.shape_cast %188 : vector<1x8x128xf32> to vector<8x128xf32>
    %190 = vector.shape_cast %185 : vector<8x128xf32> to vector<1x8x128xf32>
    tpu.vector_store %arg11[%c1_103, %c0_104, %c0_105], %190 {strides = array<i32>} : memref<2x8x128xf32, #tpu.memory_space<vmem>>, vector<1x8x128xf32>,
    %c0_106 = arith.constant 0 : index
    %c0_107 = arith.constant 0 : index
    %191 = vector.load %arg8[%c0_106, %c0_107] : memref<128x128xbf16, #tpu.memory_space<vmem>>, vector<128x128xbf16>
    %c0_108 = arith.constant 0 : index
    %c0_109 = arith.constant 0 : index
    %192 = vector.load %arg9[%c0_108, %c0_109] : memref<1x128xf32, #tpu.memory_space<vmem>>, vector<1x128xf32>
    %c0_110 = arith.constant 0 : index
    %c0_111 = arith.constant 0 : index
    %193 = vector.load %arg12[%c0_110, %c0_111] : memref<64x128xf32, #tpu.memory_space<vmem>>, vector<64x128xf32>
    %194 = arith.truncf %193 : vector<64x128xf32> to vector<64x128xbf16>
    %cst_112 = arith.constant dense<0.000000e+00> : vector<64x128xf32>
    %195 = tpu.matmul %194, %191, %cst_112 {dimension_numbers = #tpu.dot_dimension_numbers<[1], [0], [0], [1], [0, 0, 1, 1], [], []>} : vector<64x128xbf16>, vector<128x128xbf16>, vector<64x128xf32> -> vector<64x128xf32>
    %196 = vector.broadcast %192 : vector<1x128xf32> to vector<64x128xf32>
    %197 = arith.addf %195, %196 : vector<64x128xf32>
    %c0_113 = arith.constant 0 : index
    %c0_114 = arith.constant 0 : index
    %198 = vector.load %arg10[%c0_113, %c0_114] : memref<64x128xf32, #tpu.memory_space<vmem>>, vector<64x128xf32>
    tpu.vector_store %arg10[%c0_113, %c0_114], %197 {strides = array<i32>} : memref<64x128xf32, #tpu.memory_space<vmem>>, vector<64x128xf32>,
    return
  }
  func.func @transform_0(%arg0: i32) -> (i32, i32) {
    %c0_i32 = arith.constant 0 : i32
    %c0_i32_0 = arith.constant 0 : i32
    return %arg0, %c0_i32 : i32, i32
  }
  func.func @transform_1(%arg0: i32) -> (i32, i32) {
    %c0_i32 = arith.constant 0 : i32
    %c0_i32_0 = arith.constant 0 : i32
    %c0_i32_1 = arith.constant 0 : i32
    return %c0_i32, %c0_i32_0 : i32, i32
  }
  func.func @transform_2(%arg0: i32) -> (i32, i32) {
    %c0_i32 = arith.constant 0 : i32
    %c0_i32_0 = arith.constant 0 : i32
    %c0_i32_1 = arith.constant 0 : i32
    return %c0_i32, %c0_i32_0 : i32, i32
  }
  func.func @transform_3(%arg0: i32) -> (i32, i32) {
    %c0_i32 = arith.constant 0 : i32
    %c0_i32_0 = arith.constant 0 : i32
    %c0_i32_1 = arith.constant 0 : i32
    return %c0_i32, %c0_i32_0 : i32, i32
  }
  func.func @transform_4(%arg0: i32) -> (i32, i32) {
    %c0_i32 = arith.constant 0 : i32
    %c0_i32_0 = arith.constant 0 : i32
    %c0_i32_1 = arith.constant 0 : i32
    return %c0_i32, %c0_i32_0 : i32, i32
  }
  func.func @transform_5(%arg0: i32) -> (i32, i32) {
    %c0_i32 = arith.constant 0 : i32
    %c0_i32_0 = arith.constant 0 : i32
    %c0_i32_1 = arith.constant 0 : i32
    return %c0_i32, %c0_i32_0 : i32, i32
  }
  func.func @transform_6(%arg0: i32) -> (i32, i32) {
    %c0_i32 = arith.constant 0 : i32
    %c0_i32_0 = arith.constant 0 : i32
    %c0_i32_1 = arith.constant 0 : i32
    return %c0_i32, %c0_i32_0 : i32, i32
  }
  func.func @transform_7(%arg0: i32) -> (i32, i32) {
    %c0_i32 = arith.constant 0 : i32
    %c0_i32_0 = arith.constant 0 : i32
    %c0_i32_1 = arith.constant 0 : i32
    return %c0_i32, %c0_i32_0 : i32, i32
  }
  func.func @transform_8(%arg0: i32) -> (i32, i32) {
    %c0_i32 = arith.constant 0 : i32
    %c0_i32_0 = arith.constant 0 : i32
    %c0_i32_1 = arith.constant 0 : i32
    return %c0_i32, %c0_i32_0 : i32, i32
  }
  func.func @transform_9(%arg0: i32) -> (i32, i32) {
    %c0_i32 = arith.constant 0 : i32
    %c0_i32_0 = arith.constant 0 : i32
    return %arg0, %c0_i32 : i32, i32
  }
}

</mosaic_0001>

<llo_original>
// kernel: tpu_custom_call.1
$region0: #{tpu_custom_call.1}
  #allocation0 [shape = 'u32[]', space=smem, size = 0x4, offset = 0x4, fixed_abs, tag = 'smem constant byte address 0x4 - core index']
  #allocation1 [shape = 'u32[72,128]{1,0:T(1,128)}', space=vmem, size = 0x9000, scoped, tag = 'internal scratch']
  #allocation2 [shape = 'f32[2,8,128]{2,1,0:T(8,128)}', space=vmem, size = 0x2000, scoped, tag = 'scratch operand']
  #allocation3 [shape = 'f32[64,128]{1,0:T(8,128)}', space=vmem, size = 0x8000, scoped, tag = 'scratch operand']
  %s0 = inlined_call_operand.vmem [shape: f32[64,16], index: 0, kind: input, shape index: {}]
  %s1 = inlined_call_operand.vmem [shape: bf16[16,128], index: 1, kind: input, shape index: {}]
  %s2 = inlined_call_operand.vmem [shape: bf16[128,128], index: 2, kind: input, shape index: {}]
  %s3 = inlined_call_operand.vmem [shape: f32[1,128], index: 3, kind: input, shape index: {}]
  %s4 = inlined_call_operand.hbm [shape: bf16[128,128], index: 4, kind: input, shape index: {}]
  %s5 = inlined_call_operand.hbm [shape: bf16[128,128], index: 5, kind: input, shape index: {}]
  %s6 = inlined_call_operand.vmem [shape: f32[1,128], index: 6, kind: input, shape index: {}]
  %s7 = inlined_call_operand.hbm [shape: bf16[128,128], index: 7, kind: input, shape index: {}]
  %s8 = inlined_call_operand.vmem [shape: f32[1,128], index: 8, kind: input, shape index: {}]
  %s9 = inlined_call_operand.hbm [shape: f32[64,128], index: 9, kind: output, shape index: {}]
  %s10 = sld [smem:[#allocation0]]
  $region62: #{tpu_custom_call.1} parent=0
    _
  %s12 = ssub.s32 1, %s10
  %s13 = scalar_select 0, %s12, %s10
  $region1: #{tpu_custom_call.1} parent=0
    #allocation4 [shape = 'u8[32768]{0}', space=vmem, size = 0x8000, scoped, tag = 'input window, operand 4, single buffered']
    #allocation5 [shape = 's32[1]{0}', space=sflag, size = 0x4, scoped, tag = 'scoped memory for tpu_custom_call.1']
    #allocation6 [shape = 's32[1]{0}', space=sflag, size = 0x4, scoped, tag = 'scoped memory for tpu_custom_call.1']
    #allocation7 [shape = 'u8[32768]{0}', space=vmem, size = 0x8000, scoped, tag = 'input window, operand 5, single buffered']
    #allocation8 [shape = 's32[1]{0}', space=sflag, size = 0x4, scoped, tag = 'scoped memory for tpu_custom_call.1']
    #allocation9 [shape = 'u8[32768]{0}', space=vmem, size = 0x8000, scoped, tag = 'input window, operand 7, single buffered']
    #allocation10 [shape = 'u8[32768]{0}', space=vmem, size = 0x8000, scoped, tag = 'output window, operand 0, single buffered']
    %14 = vsyncpa [#allocation5], 0
    %15 = vsyncpa [#allocation8], 0
    %16 = vsyncpa [#allocation6], 0
    // Predicated region
    $region2: #{tpu_custom_call.1} parent=1 // pred_check
      _
    $region3: #{tpu_custom_call.1} parent=1 // pred_check_branch
      %18 = sbr.rel (0) target = $region5
    $region4: #{tpu_custom_call.1} parent=1 // pred_region
      _
    $region5: #{tpu_custom_call.1} parent=1 // pred_fallthru
      _
    // Predicated region
    $region6: #{tpu_custom_call.1} parent=1 // pred_check
      _
    $region7: #{tpu_custom_call.1} parent=1 // pred_check_branch
      %20 = sbr.rel (0) target = $region9
    $region8: #{tpu_custom_call.1} parent=1 // pred_region
      _
    $region9: #{tpu_custom_call.1} parent=1 // pred_fallthru
      _
    // Predicated region
    $region10: #{tpu_custom_call.1} parent=1 // pred_check
      _
    $region11: #{tpu_custom_call.1} parent=1 // pred_check_branch
      %22 = sbr.rel (0) target = $region13
    $region12: #{tpu_custom_call.1} parent=1 // pred_region
      _
    $region13: #{tpu_custom_call.1} parent=1 // pred_fallthru
      _
    // Predicated region
    $region14: #{tpu_custom_call.1} parent=1 // pred_check
      _
    $region15: #{tpu_custom_call.1} parent=1 // pred_check_branch
      %24 = sbr.rel (0) target = $region17
    $region16: #{tpu_custom_call.1} parent=1 // pred_region
      _
    $region17: #{tpu_custom_call.1} parent=1 // pred_fallthru
      _
    // Predicated region
    $region18: #{tpu_custom_call.1} parent=1 // pred_check
      _
    $region19: #{tpu_custom_call.1} parent=1 // pred_check_branch
      %26 = sbr.rel (0) target = $region21
    $region20: #{tpu_custom_call.1} parent=1 // pred_region
      %28 = vsyncadd [#allocation5], 0
      %s29 = sshll.u32 %s4, 4
      %s30 = int_to_ptr.hbm [resolvable:$true] %s29
      %s31 = sshll.u32 [#allocation4], 4
      %s32 = int_to_ptr.vmem [resolvable:$true] %s31
      %37 = dma.hbm_to_vmem [thread:$0]  %s30, 1024, %s32, [#allocation5], 64, 64, 4
    $region21: #{tpu_custom_call.1} parent=1 // pred_fallthru
      _
    // Predicated region
    $region22: #{tpu_custom_call.1} parent=1 // pred_check
      _
    $region23: #{tpu_custom_call.1} parent=1 // pred_check_branch
      %39 = sbr.rel (0) target = $region25
    $region24: #{tpu_custom_call.1} parent=1 // pred_region
      %41 = vsyncadd [#allocation8], 0
      %s42 = sshll.u32 %s5, 4
      %s43 = int_to_ptr.hbm [resolvable:$true] %s42
      %s44 = sshll.u32 [#allocation7], 4
      %s45 = int_to_ptr.vmem [resolvable:$true] %s44
      %50 = dma.hbm_to_vmem [thread:$0]  %s43, 1024, %s45, [#allocation8], 64, 64, 4
    $region25: #{tpu_custom_call.1} parent=1 // pred_fallthru
      _
    // Predicated region
    $region26: #{tpu_custom_call.1} parent=1 // pred_check
      _
    $region27: #{tpu_custom_call.1} parent=1 // pred_check_branch
      %52 = sbr.rel (0) target = $region29
    $region28: #{tpu_custom_call.1} parent=1 // pred_region
      _
    $region29: #{tpu_custom_call.1} parent=1 // pred_fallthru
      _
    // Predicated region
    $region30: #{tpu_custom_call.1} parent=1 // pred_check
      _
    $region31: #{tpu_custom_call.1} parent=1 // pred_check_branch
      %54 = sbr.rel (0) target = $region33
    $region32: #{tpu_custom_call.1} parent=1 // pred_region
      %56 = vsyncadd [#allocation8], 0
      %s57 = sshll.u32 %s7, 4
      %s58 = int_to_ptr.hbm [resolvable:$true] %s57
      %s59 = sshll.u32 [#allocation9], 4
      %s60 = int_to_ptr.vmem [resolvable:$true] %s59
      %65 = dma.hbm_to_vmem [thread:$0]  %s58, 1024, %s60, [#allocation8], 64, 64, 4
    $region33: #{tpu_custom_call.1} parent=1 // pred_fallthru
      _
    // Predicated region
    $region34: #{tpu_custom_call.1} parent=1 // pred_check
      _
    $region35: #{tpu_custom_call.1} parent=1 // pred_check_branch
      %67 = sbr.rel (0) target = $region37
    $region36: #{tpu_custom_call.1} parent=1 // pred_region
      _
    $region37: #{tpu_custom_call.1} parent=1 // pred_fallthru
      _
    // Predicated region
    $region38: #{tpu_custom_call.1} parent=1 // pred_check
      _
    $region39: #{tpu_custom_call.1} parent=1 // pred_check_branch
      %69 = sbr.rel (0) target = $region41
    $region40: #{tpu_custom_call.1} parent=1 // pred_region
      %71 = dma.done [#allocation5], 1024
    $region41: #{tpu_custom_call.1} parent=1 // pred_fallthru
      _
    // Predicated region
    $region42: #{tpu_custom_call.1} parent=1 // pred_check
      _
    $region43: #{tpu_custom_call.1} parent=1 // pred_check_branch
      %73 = sbr.rel (0) target = $region45
    $region44: #{tpu_custom_call.1} parent=1 // pred_region
      %75 = dma.done [#allocation8], 1024
    $region45: #{tpu_custom_call.1} parent=1 // pred_fallthru
      _
    // Predicated region
    $region46: #{tpu_custom_call.1} parent=1 // pred_check
      _
    $region47: #{tpu_custom_call.1} parent=1 // pred_check_branch
      %77 = sbr.rel (0) target = $region49
    $region48: #{tpu_custom_call.1} parent=1 // pred_region
      %79 = dma.done [#allocation8], 1024
    $region49: #{tpu_custom_call.1} parent=1 // pred_fallthru
      _
    %p81 = scmp.eq.s32.totalorder 0, 0
    // Predicated region
    $region50: #{tpu_custom_call.1} parent=1 // pred_check
      %p82 = pneg %p81
    $region51: #{tpu_custom_call.1} parent=1 // pred_check_branch
      %84 = sbr.rel (%p82) target = $region53
    $region52: #{tpu_custom_call.1} parent=1 // pred_region
      %85 = vst [vmem:[#allocation2] sm:$0xff] 0.0
      %86 = vst [vmem:[#allocation2 + $0x8] sm:$0xff] 0.0
    $region53: #{tpu_custom_call.1} parent=1 // pred_fallthru
      _
    %v87 = vld [vmem:[%s1] sm:$0xf]
    %v88 = vld [vmem:[%s1 + $0x4] sm:$0xf]
    %v89 = vld [vmem:[%s2] sm:$0xf]
    %v90 = vld [vmem:[%s2 + $0x4] sm:$0xf]
    %v91 = vld [vmem:[%s2 + $0x8] sm:$0xf]
    %v92 = vld [vmem:[%s2 + $0xc] sm:$0xf]
    %v93 = vld [vmem:[%s2 + $0x10] sm:$0xf]
    %v94 = vld [vmem:[%s2 + $0x14] sm:$0xf]
    %v95 = vld [vmem:[%s2 + $0x18] sm:$0xf]
    %v96 = vld [vmem:[%s2 + $0x1c] sm:$0xf]
    %v97 = vld [vmem:[%s2 + $0x20] sm:$0xf]
    %v98 = vld [vmem:[%s2 + $0x24] sm:$0xf]
    %v99 = vld [vmem:[%s2 + $0x28] sm:$0xf]
    %v100 = vld [vmem:[%s2 + $0x2c] sm:$0xf]
    %v101 = vld [vmem:[%s2 + $0x30] sm:$0xf]
    %v102 = vld [vmem:[%s2 + $0x34] sm:$0xf]
    %v103 = vld [vmem:[%s2 + $0x38] sm:$0xf]
    %v104 = vld [vmem:[%s2 + $0x3c] sm:$0xf]
    %v105 = vld [vmem:[%s3] sm:$0x1]
    %v106 = vld [vmem:[%s0] sm:$0xff]
    %v107 = vld [vmem:[%s0 + $0x8] sm:$0xff]
    %v108 = vld [vmem:[%s0 + $0x10] sm:$0xff]
    %v109 = vld [vmem:[%s0 + $0x18] sm:$0xff]
    %v110 = vld [vmem:[%s0 + $0x20] sm:$0xff]
    %v111 = vld [vmem:[%s0 + $0x28] sm:$0xff]
    %v112 = vld [vmem:[%s0 + $0x30] sm:$0xff]
    %v113 = vld [vmem:[%s0 + $0x38] sm:$0xff]
    %v114 = vpack.c.bf16 %v107, %v106
    %v115 = vpack.c.bf16 %v109, %v108
    %v116 = vpack.c.bf16 %v111, %v110
    %v117 = vpack.c.bf16 %v113, %v112
    %v119 = vperm.slane %v105, 0
    %v123 = vunpack.c.l.b16 %v87
    %v124 = vunpack.c.l.b16 %v88
    %v125 = vpack.c.b16 %v124, %v123
    %vm127 = vcmask 130048
    %v129 = vsel %vm127, %v114, 0
    %v132 = vsel %vm127, %v115, 0
    %v135 = vsel %vm127, %v116, 0
    %v138 = vsel %vm127, %v117, 0
    %140 = vmatpush.bf16.msra.mxu0 0
    %141 = vmatpush.bf16.msra.mxu0 0
    %142 = vmatpush.bf16.msra.mxu0 0
    %143 = vmatpush.bf16.msra.mxu0 0
    %144 = vmatpush.bf16.msra.mxu0 0
    %145 = vmatpush.bf16.msra.mxu0 0
    %146 = vmatpush.bf16.msra.mxu0 0
    %147 = vmatpush.bf16.msra.mxu0 %v125
    %148 = vmatmul.bf16.gmra.mxu0 %v129
    %v149 = vpop.f32.mrf.mxu0
    %v150 = vadd.f32 %v119, %v149
    %v151 = vpop.f32.mrf.mxu0
    %v152 = vadd.f32 %v119, %v151
    %153 = vmatmul.bf16.gmra.mxu0 %v132
    %v154 = vpop.f32.mrf.mxu0
    %v155 = vadd.f32 %v119, %v154
    %v156 = vpop.f32.mrf.mxu0
    %v157 = vadd.f32 %v119, %v156
    %158 = vmatmul.bf16.gmra.mxu0 %v135
    %v159 = vpop.f32.mrf.mxu0
    %v160 = vadd.f32 %v119, %v159
    %v161 = vpop.f32.mrf.mxu0
    %v162 = vadd.f32 %v119, %v161
    %163 = vmatmul.bf16.gmra.mxu0 %v138
    %v164 = vpop.f32.mrf.mxu0
    %v165 = vadd.f32 %v119, %v164
    %v166 = vpop.f32.mrf.mxu0
    %v167 = vadd.f32 %v119, %v166
    %168 = vdwg.mxu0
    %169 = vst [vmem:[#allocation3] sm:$0xff] %v150
    %170 = vst [vmem:[#allocation3 + $0x8] sm:$0xff] %v152
    %171 = vst [vmem:[#allocation3 + $0x10] sm:$0xff] %v155
    %172 = vst [vmem:[#allocation3 + $0x18] sm:$0xff] %v157
    %173 = vst [vmem:[#allocation3 + $0x20] sm:$0xff] %v160
    %174 = vst [vmem:[#allocation3 + $0x28] sm:$0xff] %v162
    %175 = vst [vmem:[#allocation3 + $0x30] sm:$0xff] %v165
    %176 = vst [vmem:[#allocation3 + $0x38] sm:$0xff] %v167
    %v177 = vld [vmem:[#allocation2] sm:$0xff]
    %v178 = vld [vmem:[#allocation3] sm:$0xff]
    %v179 = vpack.c.bf16 %v177, %v177
    %v196 = vunpack.c.l.b16 %v89
    %v197 = vunpack.c.l.b16 %v90
    %v198 = vunpack.c.l.b16 %v91
    %v199 = vunpack.c.l.b16 %v92
    %v200 = vunpack.c.l.b16 %v93
    %v201 = vunpack.c.l.b16 %v94
    %v202 = vunpack.c.l.b16 %v95
    %v203 = vunpack.c.l.b16 %v96
    %v204 = vunpack.c.l.b16 %v97
    %v205 = vunpack.c.l.b16 %v98
    %v206 = vunpack.c.l.b16 %v99
    %v207 = vunpack.c.l.b16 %v100
    %v208 = vunpack.c.l.b16 %v101
    %v209 = vunpack.c.l.b16 %v102
    %v210 = vunpack.c.l.b16 %v103
    %v211 = vunpack.c.l.b16 %v104
    %v212 = vpack.c.b16 %v197, %v196
    %v213 = vpack.c.b16 %v199, %v198
    %v214 = vpack.c.b16 %v201, %v200
    %v215 = vpack.c.b16 %v203, %v202
    %v216 = vpack.c.b16 %v205, %v204
    %v217 = vpack.c.b16 %v207, %v206
    %v218 = vpack.c.b16 %v209, %v208
    %v219 = vpack.c.b16 %v211, %v210
    %228 = vmatpush.bf16.msra.mxu0 %v219
    %229 = vmatpush.bf16.msra.mxu0 %v218
    %230 = vmatpush.bf16.msra.mxu0 %v217
    %231 = vmatpush.bf16.msra.mxu0 %v216
    %232 = vmatpush.bf16.msra.mxu0 %v215
    %233 = vmatpush.bf16.msra.mxu0 %v214
    %234 = vmatpush.bf16.msra.mxu0 %v213
    %235 = vmatpush.bf16.msra.mxu0 %v212
    %236 = vmatmul.bf16.gmra.mxu0 %v179
    %v237 = vpop.f32.mrf.mxu0
    %v238 = vadd.f32 0.0, %v237
    %v239 = vpop.f32.mrf.mxu0
    %240 = vdwg.mxu0
    %v241 = vadd.f32 %v178, %v238
    %v242 = vtanh.pop %v241
    %243 = vst [vmem:[#allocation3] sm:$0xff] %v242
    %s244 = scalar_lea.vmem [#allocation3], 8
    %v245 = vld [vmem:[%s244] sm:$0xff]
    %v246 = vpack.c.bf16 %v242, %v242
    %247 = vmatpush.bf16.msra.mxu0 %v219
    %248 = vmatpush.bf16.msra.mxu0 %v218
    %249 = vmatpush.bf16.msra.mxu0 %v217
    %250 = vmatpush.bf16.msra.mxu0 %v216
    %251 = vmatpush.bf16.msra.mxu0 %v215
    %252 = vmatpush.bf16.msra.mxu0 %v214
    %253 = vmatpush.bf16.msra.mxu0 %v213
    %254 = vmatpush.bf16.msra.mxu0 %v212
    %255 = vmatmul.bf16.gmra.mxu0 %v246
    %v256 = vpop.f32.mrf.mxu0
    %v257 = vadd.f32 0.0, %v256
    %v258 = vpop.f32.mrf.mxu0
    %259 = vdwg.mxu0
    %v260 = vadd.f32 %v245, %v257
    %v261 = vtanh.pop %v260
    %262 = vst [vmem:[%s244] sm:$0xff] %v261
    %s263 = scalar_lea.vmem [#allocation3], 16
    %v264 = vld [vmem:[%s263] sm:$0xff]
    %v265 = vpack.c.bf16 %v261, %v261
    %266 = vmatpush.bf16.msra.mxu0 %v219
    %267 = vmatpush.bf16.msra.mxu0 %v218
    %268 = vmatpush.bf16.msra.mxu0 %v217
    %269 = vmatpush.bf16.msra.mxu0 %v216
    %270 = vmatpush.bf16.msra.mxu0 %v215
    %271 = vmatpush.bf16.msra.mxu0 %v214
    %272 = vmatpush.bf16.msra.mxu0 %v213
    %273 = vmatpush.bf16.msra.mxu0 %v212
    %274 = vmatmul.bf16.gmra.mxu0 %v265
    %v275 = vpop.f32.mrf.mxu0
    %v276 = vadd.f32 0.0, %v275
    %v277 = vpop.f32.mrf.mxu0
    %278 = vdwg.mxu0
    %v279 = vadd.f32 %v264, %v276
    %v280 = vtanh.pop %v279
    %281 = vst [vmem:[%s263] sm:$0xff] %v280
    %s282 = scalar_lea.vmem [#allocation3], 24
    %v283 = vld [vmem:[%s282] sm:$0xff]
    %v284 = vpack.c.bf16 %v280, %v280
    %285 = vmatpush.bf16.msra.mxu0 %v219
    %286 = vmatpush.bf16.msra.mxu0 %v218
    %287 = vmatpush.bf16.msra.mxu0 %v217
    %288 = vmatpush.bf16.msra.mxu0 %v216
    %289 = vmatpush.bf16.msra.mxu0 %v215
    %290 = vmatpush.bf16.msra.mxu0 %v214
    %291 = vmatpush.bf16.msra.mxu0 %v213
    %292 = vmatpush.bf16.msra.mxu0 %v212
    %293 = vmatmul.bf16.gmra.mxu0 %v284
    %v294 = vpop.f32.mrf.mxu0
    %v295 = vadd.f32 0.0, %v294
    %v296 = vpop.f32.mrf.mxu0
    %297 = vdwg.mxu0
    %v298 = vadd.f32 %v283, %v295
    %v299 = vtanh.pop %v298
    %300 = vst [vmem:[%s282] sm:$0xff] %v299
    %s301 = scalar_lea.vmem [#allocation3], 32
    %v302 = vld [vmem:[%s301] sm:$0xff]
    %v303 = vpack.c.bf16 %v299, %v299
    %304 = vmatpush.bf16.msra.mxu0 %v219
    %305 = vmatpush.bf16.msra.mxu0 %v218
    %306 = vmatpush.bf16.msra.mxu0 %v217
    %307 = vmatpush.bf16.msra.mxu0 %v216
    %308 = vmatpush.bf16.msra.mxu0 %v215
    %309 = vmatpush.bf16.msra.mxu0 %v214
    %310 = vmatpush.bf16.msra.mxu0 %v213
    %311 = vmatpush.bf16.msra.mxu0 %v212
    %312 = vmatmul.bf16.gmra.mxu0 %v303
    %v313 = vpop.f32.mrf.mxu0
    %v314 = vadd.f32 0.0, %v313
    %v315 = vpop.f32.mrf.mxu0
    %316 = vdwg.mxu0
    %v317 = vadd.f32 %v302, %v314
    %v318 = vtanh.pop %v317
    %319 = vst [vmem:[%s301] sm:$0xff] %v318
    %s320 = scalar_lea.vmem [#allocation3], 40
    %v321 = vld [vmem:[%s320] sm:$0xff]
    %v322 = vpack.c.bf16 %v318, %v318
    %323 = vmatpush.bf16.msra.mxu0 %v219
    %324 = vmatpush.bf16.msra.mxu0 %v218
    %325 = vmatpush.bf16.msra.mxu0 %v217
    %326 = vmatpush.bf16.msra.mxu0 %v216
    %327 = vmatpush.bf16.msra.mxu0 %v215
    %328 = vmatpush.bf16.msra.mxu0 %v214
    %329 = vmatpush.bf16.msra.mxu0 %v213
    %330 = vmatpush.bf16.msra.mxu0 %v212
    %331 = vmatmul.bf16.gmra.mxu0 %v322
    %v332 = vpop.f32.mrf.mxu0
    %v333 = vadd.f32 0.0, %v332
    %v334 = vpop.f32.mrf.mxu0
    %335 = vdwg.mxu0
    %v336 = vadd.f32 %v321, %v333
    %v337 = vtanh.pop %v336
    %338 = vst [vmem:[%s320] sm:$0xff] %v337
    %s339 = scalar_lea.vmem [#allocation3], 48
    %v340 = vld [vmem:[%s339] sm:$0xff]
    %v341 = vpack.c.bf16 %v337, %v337
    %342 = vmatpush.bf16.msra.mxu0 %v219
    %343 = vmatpush.bf16.msra.mxu0 %v218
    %344 = vmatpush.bf16.msra.mxu0 %v217
    %345 = vmatpush.bf16.msra.mxu0 %v216
    %346 = vmatpush.bf16.msra.mxu0 %v215
    %347 = vmatpush.bf16.msra.mxu0 %v214
    %348 = vmatpush.bf16.msra.mxu0 %v213
    %349 = vmatpush.bf16.msra.mxu0 %v212
    %350 = vmatmul.bf16.gmra.mxu0 %v341
    %v351 = vpop.f32.mrf.mxu0
    %v352 = vadd.f32 0.0, %v351
    %v353 = vpop.f32.mrf.mxu0
    %354 = vdwg.mxu0
    %v355 = vadd.f32 %v340, %v352
    %v356 = vtanh.pop %v355
    %357 = vst [vmem:[%s339] sm:$0xff] %v356
    %s358 = scalar_lea.vmem [#allocation3], 56
    %v359 = vld [vmem:[%s358] sm:$0xff]
    %v360 = vpack.c.bf16 %v356, %v356
    %361 = vmatpush.bf16.msra.mxu0 %v219
    %362 = vmatpush.bf16.msra.mxu0 %v218
    %363 = vmatpush.bf16.msra.mxu0 %v217
    %364 = vmatpush.bf16.msra.mxu0 %v216
    %365 = vmatpush.bf16.msra.mxu0 %v215
    %366 = vmatpush.bf16.msra.mxu0 %v214
    %367 = vmatpush.bf16.msra.mxu0 %v213
    %368 = vmatpush.bf16.msra.mxu0 %v212
    %369 = vmatmul.bf16.gmra.mxu0 %v360
    %v370 = vpop.f32.mrf.mxu0
    %v371 = vadd.f32 0.0, %v370
    %v372 = vpop.f32.mrf.mxu0
    %373 = vdwg.mxu0
    %v374 = vadd.f32 %v359, %v371
    %v375 = vtanh.pop %v374
    %376 = vst [vmem:[%s358] sm:$0xff] %v375
    %377 = vst [vmem:[#allocation2] sm:$0xff] %v375
    %v378 = vld [vmem:[#allocation4] sm:$0xf]
    %v379 = vld [vmem:[#allocation4 + $0x4] sm:$0xf]
    %v380 = vld [vmem:[#allocation4 + $0x8] sm:$0xf]
    %v381 = vld [vmem:[#allocation4 + $0xc] sm:$0xf]
    %v382 = vld [vmem:[#allocation4 + $0x10] sm:$0xf]
    %v383 = vld [vmem:[#allocation4 + $0x14] sm:$0xf]
    %v384 = vld [vmem:[#allocation4 + $0x18] sm:$0xf]
    %v385 = vld [vmem:[#allocation4 + $0x1c] sm:$0xf]
    %v386 = vld [vmem:[#allocation4 + $0x20] sm:$0xf]
    %v387 = vld [vmem:[#allocation4 + $0x24] sm:$0xf]
    %v388 = vld [vmem:[#allocation4 + $0x28] sm:$0xf]
    %v389 = vld [vmem:[#allocation4 + $0x2c] sm:$0xf]
    %v390 = vld [vmem:[#allocation4 + $0x30] sm:$0xf]
    %v391 = vld [vmem:[#allocation4 + $0x34] sm:$0xf]
    %v392 = vld [vmem:[#allocation4 + $0x38] sm:$0xf]
    %v393 = vld [vmem:[#allocation4 + $0x3c] sm:$0xf]
    %v394 = vld [vmem:[#allocation7] sm:$0xf]
    %v395 = vld [vmem:[#allocation7 + $0x4] sm:$0xf]
    %v396 = vld [vmem:[#allocation7 + $0x8] sm:$0xf]
    %v397 = vld [vmem:[#allocation7 + $0xc] sm:$0xf]
    %v398 = vld [vmem:[#allocation7 + $0x10] sm:$0xf]
    %v399 = vld [vmem:[#allocation7 + $0x14] sm:$0xf]
    %v400 = vld [vmem:[#allocation7 + $0x18] sm:$0xf]
    %v401 = vld [vmem:[#allocation7 + $0x1c] sm:$0xf]
    %v402 = vld [vmem:[#allocation7 + $0x20] sm:$0xf]
    %v403 = vld [vmem:[#allocation7 + $0x24] sm:$0xf]
    %v404 = vld [vmem:[#allocation7 + $0x28] sm:$0xf]
    %v405 = vld [vmem:[#allocation7 + $0x2c] sm:$0xf]
    %v406 = vld [vmem:[#allocation7 + $0x30] sm:$0xf]
    %v407 = vld [vmem:[#allocation7 + $0x34] sm:$0xf]
    %v408 = vld [vmem:[#allocation7 + $0x38] sm:$0xf]
    %v409 = vld [vmem:[#allocation7 + $0x3c] sm:$0xf]
    %v410 = vld [vmem:[%s6] sm:$0x1]
    %v411 = vld [vmem:[#allocation3] sm:$0xff]
    %v412 = vld [vmem:[#allocation3 + $0x8] sm:$0xff]
    %v413 = vld [vmem:[#allocation3 + $0x10] sm:$0xff]
    %v414 = vld [vmem:[#allocation3 + $0x18] sm:$0xff]
    %v415 = vld [vmem:[#allocation3 + $0x20] sm:$0xff]
    %v416 = vld [vmem:[#allocation3 + $0x28] sm:$0xff]
    %v417 = vld [vmem:[#allocation3 + $0x30] sm:$0xff]
    %v418 = vld [vmem:[#allocation3 + $0x38] sm:$0xff]
    %v419 = vpack.c.bf16 %v412, %v411
    %v420 = vpack.c.bf16 %v414, %v413
    %v421 = vpack.c.bf16 %v416, %v415
    %v422 = vpack.c.bf16 %v418, %v417
    %v424 = vperm.slane %v410, 0
    %v442 = vunpack.c.l.b16 %v378
    %v443 = vunpack.c.l.b16 %v379
    %v444 = vunpack.c.l.b16 %v380
    %v445 = vunpack.c.l.b16 %v381
    %v446 = vunpack.c.l.b16 %v382
    %v447 = vunpack.c.l.b16 %v383
    %v448 = vunpack.c.l.b16 %v384
    %v449 = vunpack.c.l.b16 %v385
    %v450 = vunpack.c.l.b16 %v386
    %v451 = vunpack.c.l.b16 %v387
    %v452 = vunpack.c.l.b16 %v388
    %v453 = vunpack.c.l.b16 %v389
    %v454 = vunpack.c.l.b16 %v390
    %v455 = vunpack.c.l.b16 %v391
    %v456 = vunpack.c.l.b16 %v392
    %v457 = vunpack.c.l.b16 %v393
    %v458 = vpack.c.b16 %v443, %v442
    %v459 = vpack.c.b16 %v445, %v444
    %v460 = vpack.c.b16 %v447, %v446
    %v461 = vpack.c.b16 %v449, %v448
    %v462 = vpack.c.b16 %v451, %v450
    %v463 = vpack.c.b16 %v453, %v452
    %v464 = vpack.c.b16 %v455, %v454
    %v465 = vpack.c.b16 %v457, %v456
    %474 = vmatpush.bf16.msra.mxu0 %v465
    %475 = vmatpush.bf16.msra.mxu0 %v464
    %476 = vmatpush.bf16.msra.mxu0 %v463
    %477 = vmatpush.bf16.msra.mxu0 %v462
    %478 = vmatpush.bf16.msra.mxu0 %v461
    %479 = vmatpush.bf16.msra.mxu0 %v460
    %480 = vmatpush.bf16.msra.mxu0 %v459
    %481 = vmatpush.bf16.msra.mxu0 %v458
    %482 = vmatmul.bf16.gmra.mxu0 %v419
    %v483 = vpop.f32.mrf.mxu0
    %v484 = vadd.f32 %v424, %v483
    %v485 = vpop.f32.mrf.mxu0
    %v486 = vadd.f32 %v424, %v485
    %487 = vmatmul.bf16.gmra.mxu0 %v420
    %v488 = vpop.f32.mrf.mxu0
    %v489 = vadd.f32 %v424, %v488
    %v490 = vpop.f32.mrf.mxu0
    %v491 = vadd.f32 %v424, %v490
    %492 = vmatmul.bf16.gmra.mxu0 %v421
    %v493 = vpop.f32.mrf.mxu0
    %v494 = vadd.f32 %v424, %v493
    %v495 = vpop.f32.mrf.mxu0
    %v496 = vadd.f32 %v424, %v495
    %497 = vmatmul.bf16.gmra.mxu0 %v422
    %v498 = vpop.f32.mrf.mxu0
    %v499 = vadd.f32 %v424, %v498
    %v500 = vpop.f32.mrf.mxu0
    %v501 = vadd.f32 %v424, %v500
    %502 = vdwg.mxu0
    %503 = vst [vmem:[#allocation3] sm:$0xff] %v484
    %504 = vst [vmem:[#allocation3 + $0x8] sm:$0xff] %v486
    %505 = vst [vmem:[#allocation3 + $0x10] sm:$0xff] %v489
    %506 = vst [vmem:[#allocation3 + $0x18] sm:$0xff] %v491
    %507 = vst [vmem:[#allocation3 + $0x20] sm:$0xff] %v494
    %508 = vst [vmem:[#allocation3 + $0x28] sm:$0xff] %v496
    %509 = vst [vmem:[#allocation3 + $0x30] sm:$0xff] %v499
    %510 = vst [vmem:[#allocation3 + $0x38] sm:$0xff] %v501
    %s511 = scalar_lea.vmem [#allocation2], 8
    %v512 = vld [vmem:[%s511] sm:$0xff]
    %v513 = vld [vmem:[#allocation3] sm:$0xff]
    %v514 = vpack.c.bf16 %v512, %v512
    %v531 = vunpack.c.l.b16 %v394
    %v532 = vunpack.c.l.b16 %v395
    %v533 = vunpack.c.l.b16 %v396
    %v534 = vunpack.c.l.b16 %v397
    %v535 = vunpack.c.l.b16 %v398
    %v536 = vunpack.c.l.b16 %v399
    %v537 = vunpack.c.l.b16 %v400
    %v538 = vunpack.c.l.b16 %v401
    %v539 = vunpack.c.l.b16 %v402
    %v540 = vunpack.c.l.b16 %v403
    %v541 = vunpack.c.l.b16 %v404
    %v542 = vunpack.c.l.b16 %v405
    %v543 = vunpack.c.l.b16 %v406
    %v544 = vunpack.c.l.b16 %v407
    %v545 = vunpack.c.l.b16 %v408
    %v546 = vunpack.c.l.b16 %v409
    %v547 = vpack.c.b16 %v532, %v531
    %v548 = vpack.c.b16 %v534, %v533
    %v549 = vpack.c.b16 %v536, %v535
    %v550 = vpack.c.b16 %v538, %v537
    %v551 = vpack.c.b16 %v540, %v539
    %v552 = vpack.c.b16 %v542, %v541
    %v553 = vpack.c.b16 %v544, %v543
    %v554 = vpack.c.b16 %v546, %v545
    %563 = vmatpush.bf16.msra.mxu0 %v554
    %564 = vmatpush.bf16.msra.mxu0 %v553
    %565 = vmatpush.bf16.msra.mxu0 %v552
    %566 = vmatpush.bf16.msra.mxu0 %v551
    %567 = vmatpush.bf16.msra.mxu0 %v550
    %568 = vmatpush.bf16.msra.mxu0 %v549
    %569 = vmatpush.bf16.msra.mxu0 %v548
    %570 = vmatpush.bf16.msra.mxu0 %v547
    %571 = vmatmul.bf16.gmra.mxu0 %v514
    %v572 = vpop.f32.mrf.mxu0
    %v573 = vadd.f32 0.0, %v572
    %v574 = vpop.f32.mrf.mxu0
    %575 = vdwg.mxu0
    %v576 = vadd.f32 %v513, %v573
    %v577 = vtanh.pop %v576
    %578 = vst [vmem:[#allocation3] sm:$0xff] %v577
    %v579 = vld [vmem:[%s244] sm:$0xff]
    %v580 = vpack.c.bf16 %v577, %v577
    %581 = vmatpush.bf16.msra.mxu0 %v554
    %582 = vmatpush.bf16.msra.mxu0 %v553
    %583 = vmatpush.bf16.msra.mxu0 %v552
    %584 = vmatpush.bf16.msra.mxu0 %v551
    %585 = vmatpush.bf16.msra.mxu0 %v550
    %586 = vmatpush.bf16.msra.mxu0 %v549
    %587 = vmatpush.bf16.msra.mxu0 %v548
    %588 = vmatpush.bf16.msra.mxu0 %v547
    %589 = vmatmul.bf16.gmra.mxu0 %v580
    %v590 = vpop.f32.mrf.mxu0
    %v591 = vadd.f32 0.0, %v590
    %v592 = vpop.f32.mrf.mxu0
    %593 = vdwg.mxu0
    %v594 = vadd.f32 %v579, %v591
    %v595 = vtanh.pop %v594
    %596 = vst [vmem:[%s244] sm:$0xff] %v595
    %v597 = vld [vmem:[%s263] sm:$0xff]
    %v598 = vpack.c.bf16 %v595, %v595
    %599 = vmatpush.bf16.msra.mxu0 %v554
    %600 = vmatpush.bf16.msra.mxu0 %v553
    %601 = vmatpush.bf16.msra.mxu0 %v552
    %602 = vmatpush.bf16.msra.mxu0 %v551
    %603 = vmatpush.bf16.msra.mxu0 %v550
    %604 = vmatpush.bf16.msra.mxu0 %v549
    %605 = vmatpush.bf16.msra.mxu0 %v548
    %606 = vmatpush.bf16.msra.mxu0 %v547
    %607 = vmatmul.bf16.gmra.mxu0 %v598
    %v608 = vpop.f32.mrf.mxu0
    %v609 = vadd.f32 0.0, %v608
    %v610 = vpop.f32.mrf.mxu0
    %611 = vdwg.mxu0
    %v612 = vadd.f32 %v597, %v609
    %v613 = vtanh.pop %v612
    %614 = vst [vmem:[%s263] sm:$0xff] %v613
    %v615 = vld [vmem:[%s282] sm:$0xff]
    %v616 = vpack.c.bf16 %v613, %v613
    %617 = vmatpush.bf16.msra.mxu0 %v554
    %618 = vmatpush.bf16.msra.mxu0 %v553
    %619 = vmatpush.bf16.msra.mxu0 %v552
    %620 = vmatpush.bf16.msra.mxu0 %v551
    %621 = vmatpush.bf16.msra.mxu0 %v550
    %622 = vmatpush.bf16.msra.mxu0 %v549
    %623 = vmatpush.bf16.msra.mxu0 %v548
    %624 = vmatpush.bf16.msra.mxu0 %v547
    %625 = vmatmul.bf16.gmra.mxu0 %v616
    %v626 = vpop.f32.mrf.mxu0
    %v627 = vadd.f32 0.0, %v626
    %v628 = vpop.f32.mrf.mxu0
    %629 = vdwg.mxu0
    %v630 = vadd.f32 %v615, %v627
    %v631 = vtanh.pop %v630
    %632 = vst [vmem:[%s282] sm:$0xff] %v631
    %v633 = vld [vmem:[%s301] sm:$0xff]
    %v634 = vpack.c.bf16 %v631, %v631
    %635 = vmatpush.bf16.msra.mxu0 %v554
    %636 = vmatpush.bf16.msra.mxu0 %v553
    %637 = vmatpush.bf16.msra.mxu0 %v552
    %638 = vmatpush.bf16.msra.mxu0 %v551
    %639 = vmatpush.bf16.msra.mxu0 %v550
    %640 = vmatpush.bf16.msra.mxu0 %v549
    %641 = vmatpush.bf16.msra.mxu0 %v548
    %642 = vmatpush.bf16.msra.mxu0 %v547
    %643 = vmatmul.bf16.gmra.mxu0 %v634
    %v644 = vpop.f32.mrf.mxu0
    %v645 = vadd.f32 0.0, %v644
    %v646 = vpop.f32.mrf.mxu0
    %647 = vdwg.mxu0
    %v648 = vadd.f32 %v633, %v645
    %v649 = vtanh.pop %v648
    %650 = vst [vmem:[%s301] sm:$0xff] %v649
    %v651 = vld [vmem:[%s320] sm:$0xff]
    %v652 = vpack.c.bf16 %v649, %v649
    %653 = vmatpush.bf16.msra.mxu0 %v554
    %654 = vmatpush.bf16.msra.mxu0 %v553
    %655 = vmatpush.bf16.msra.mxu0 %v552
    %656 = vmatpush.bf16.msra.mxu0 %v551
    %657 = vmatpush.bf16.msra.mxu0 %v550
    %658 = vmatpush.bf16.msra.mxu0 %v549
    %659 = vmatpush.bf16.msra.mxu0 %v548
    %660 = vmatpush.bf16.msra.mxu0 %v547
    %661 = vmatmul.bf16.gmra.mxu0 %v652
    %v662 = vpop.f32.mrf.mxu0
    %v663 = vadd.f32 0.0, %v662
    %v664 = vpop.f32.mrf.mxu0
    %665 = vdwg.mxu0
    %v666 = vadd.f32 %v651, %v663
    %v667 = vtanh.pop %v666
    %668 = vst [vmem:[%s320] sm:$0xff] %v667
    %v669 = vld [vmem:[%s339] sm:$0xff]
    %v670 = vpack.c.bf16 %v667, %v667
    %671 = vmatpush.bf16.msra.mxu0 %v554
    %672 = vmatpush.bf16.msra.mxu0 %v553
    %673 = vmatpush.bf16.msra.mxu0 %v552
    %674 = vmatpush.bf16.msra.mxu0 %v551
    %675 = vmatpush.bf16.msra.mxu0 %v550
    %676 = vmatpush.bf16.msra.mxu0 %v549
    %677 = vmatpush.bf16.msra.mxu0 %v548
    %678 = vmatpush.bf16.msra.mxu0 %v547
    %679 = vmatmul.bf16.gmra.mxu0 %v670
    %v680 = vpop.f32.mrf.mxu0
    %v681 = vadd.f32 0.0, %v680
    %v682 = vpop.f32.mrf.mxu0
    %683 = vdwg.mxu0
    %v684 = vadd.f32 %v669, %v681
    %v685 = vtanh.pop %v684
    %686 = vst [vmem:[%s339] sm:$0xff] %v685
    %v687 = vld [vmem:[%s358] sm:$0xff]
    %v688 = vpack.c.bf16 %v685, %v685
    %689 = vmatpush.bf16.msra.mxu0 %v554
    %690 = vmatpush.bf16.msra.mxu0 %v553
    %691 = vmatpush.bf16.msra.mxu0 %v552
    %692 = vmatpush.bf16.msra.mxu0 %v551
    %693 = vmatpush.bf16.msra.mxu0 %v550
    %694 = vmatpush.bf16.msra.mxu0 %v549
    %695 = vmatpush.bf16.msra.mxu0 %v548
    %696 = vmatpush.bf16.msra.mxu0 %v547
    %697 = vmatmul.bf16.gmra.mxu0 %v688
    %v698 = vpop.f32.mrf.mxu0
    %v699 = vadd.f32 0.0, %v698
    %v700 = vpop.f32.mrf.mxu0
    %701 = vdwg.mxu0
    %v702 = vadd.f32 %v687, %v699
    %v703 = vtanh.pop %v702
    %704 = vst [vmem:[%s358] sm:$0xff] %v703
    %705 = vst [vmem:[%s511] sm:$0xff] %v703
    %v706 = vld [vmem:[#allocation9] sm:$0xf]
    %v707 = vld [vmem:[#allocation9 + $0x4] sm:$0xf]
    %v708 = vld [vmem:[#allocation9 + $0x8] sm:$0xf]
    %v709 = vld [vmem:[#allocation9 + $0xc] sm:$0xf]
    %v710 = vld [vmem:[#allocation9 + $0x10] sm:$0xf]
    %v711 = vld [vmem:[#allocation9 + $0x14] sm:$0xf]
    %v712 = vld [vmem:[#allocation9 + $0x18] sm:$0xf]
    %v713 = vld [vmem:[#allocation9 + $0x1c] sm:$0xf]
    %v714 = vld [vmem:[#allocation9 + $0x20] sm:$0xf]
    %v715 = vld [vmem:[#allocation9 + $0x24] sm:$0xf]
    %v716 = vld [vmem:[#allocation9 + $0x28] sm:$0xf]
    %v717 = vld [vmem:[#allocation9 + $0x2c] sm:$0xf]
    %v718 = vld [vmem:[#allocation9 + $0x30] sm:$0xf]
    %v719 = vld [vmem:[#allocation9 + $0x34] sm:$0xf]
    %v720 = vld [vmem:[#allocation9 + $0x38] sm:$0xf]
    %v721 = vld [vmem:[#allocation9 + $0x3c] sm:$0xf]
    %v722 = vld [vmem:[%s8] sm:$0x1]
    %v723 = vld [vmem:[#allocation3] sm:$0xff]
    %v724 = vld [vmem:[#allocation3 + $0x8] sm:$0xff]
    %v725 = vld [vmem:[#allocation3 + $0x10] sm:$0xff]
    %v726 = vld [vmem:[#allocation3 + $0x18] sm:$0xff]
    %v727 = vld [vmem:[#allocation3 + $0x20] sm:$0xff]
    %v728 = vld [vmem:[#allocation3 + $0x28] sm:$0xff]
    %v729 = vld [vmem:[#allocation3 + $0x30] sm:$0xff]
    %v730 = vld [vmem:[#allocation3 + $0x38] sm:$0xff]
    %v731 = vpack.c.bf16 %v724, %v723
    %v732 = vpack.c.bf16 %v726, %v725
    %v733 = vpack.c.bf16 %v728, %v727
    %v734 = vpack.c.bf16 %v730, %v729
    %v736 = vperm.slane %v722, 0
    %v754 = vunpack.c.l.b16 %v706
    %v755 = vunpack.c.l.b16 %v707
    %v756 = vunpack.c.l.b16 %v708
    %v757 = vunpack.c.l.b16 %v709
    %v758 = vunpack.c.l.b16 %v710
    %v759 = vunpack.c.l.b16 %v711
    %v760 = vunpack.c.l.b16 %v712
    %v761 = vunpack.c.l.b16 %v713
    %v762 = vunpack.c.l.b16 %v714
    %v763 = vunpack.c.l.b16 %v715
    %v764 = vunpack.c.l.b16 %v716
    %v765 = vunpack.c.l.b16 %v717
    %v766 = vunpack.c.l.b16 %v718
    %v767 = vunpack.c.l.b16 %v719
    %v768 = vunpack.c.l.b16 %v720
    %v769 = vunpack.c.l.b16 %v721
    %v770 = vpack.c.b16 %v755, %v754
    %v771 = vpack.c.b16 %v757, %v756
    %v772 = vpack.c.b16 %v759, %v758
    %v773 = vpack.c.b16 %v761, %v760
    %v774 = vpack.c.b16 %v763, %v762
    %v775 = vpack.c.b16 %v765, %v764
    %v776 = vpack.c.b16 %v767, %v766
    %v777 = vpack.c.b16 %v769, %v768
    %786 = vmatpush.bf16.msra.mxu0 %v777
    %787 = vmatpush.bf16.msra.mxu0 %v776
    %788 = vmatpush.bf16.msra.mxu0 %v775
    %789 = vmatpush.bf16.msra.mxu0 %v774
    %790 = vmatpush.bf16.msra.mxu0 %v773
    %791 = vmatpush.bf16.msra.mxu0 %v772
    %792 = vmatpush.bf16.msra.mxu0 %v771
    %793 = vmatpush.bf16.msra.mxu0 %v770
    %794 = vmatmul.bf16.gmra.mxu0 %v731
    %v795 = vpop.f32.mrf.mxu0
    %v796 = vadd.f32 %v736, %v795
    %v797 = vpop.f32.mrf.mxu0
    %v798 = vadd.f32 %v736, %v797
    %799 = vmatmul.bf16.gmra.mxu0 %v732
    %v800 = vpop.f32.mrf.mxu0
    %v801 = vadd.f32 %v736, %v800
    %v802 = vpop.f32.mrf.mxu0
    %v803 = vadd.f32 %v736, %v802
    %804 = vmatmul.bf16.gmra.mxu0 %v733
    %v805 = vpop.f32.mrf.mxu0
    %v806 = vadd.f32 %v736, %v805
    %v807 = vpop.f32.mrf.mxu0
    %v808 = vadd.f32 %v736, %v807
    %809 = vmatmul.bf16.gmra.mxu0 %v734
    %v810 = vpop.f32.mrf.mxu0
    %v811 = vadd.f32 %v736, %v810
    %v812 = vpop.f32.mrf.mxu0
    %v813 = vadd.f32 %v736, %v812
    %814 = vdwg.mxu0
    %815 = vst [vmem:[#allocation10] sm:$0xff] %v796
    %816 = vst [vmem:[#allocation10 + $0x8] sm:$0xff] %v798
    %817 = vst [vmem:[#allocation10 + $0x10] sm:$0xff] %v801
    %818 = vst [vmem:[#allocation10 + $0x18] sm:$0xff] %v803
    %819 = vst [vmem:[#allocation10 + $0x20] sm:$0xff] %v806
    %820 = vst [vmem:[#allocation10 + $0x28] sm:$0xff] %v808
    %821 = vst [vmem:[#allocation10 + $0x30] sm:$0xff] %v811
    %822 = vst [vmem:[#allocation10 + $0x38] sm:$0xff] %v813
    // Predicated region
    $region54: #{tpu_custom_call.1} parent=1 // pred_check
      _
    $region55: #{tpu_custom_call.1} parent=1 // pred_check_branch
      %824 = sbr.rel (0) target = $region57
    $region56: #{tpu_custom_call.1} parent=1 // pred_region
      %826 = vsyncadd [#allocation6], 0
      %s827 = sshll.u32 [#allocation10], 4
      %s828 = int_to_ptr.vmem [resolvable:$true] %s827
      %s829 = sshll.u32 %s9, 4
      %s830 = int_to_ptr.hbm [resolvable:$true] %s829
      %835 = dma.vmem_to_hbm [thread:$0]  %s828, 1024, %s830, [#allocation6], 128, 128, 8
    $region57: #{tpu_custom_call.1} parent=1 // pred_fallthru
      _
    // Predicated region
    $region58: #{tpu_custom_call.1} parent=1 // pred_check
      _
    $region59: #{tpu_custom_call.1} parent=1 // pred_check_branch
      %837 = sbr.rel (0) target = $region61
    $region60: #{tpu_custom_call.1} parent=1 // pred_region
      %839 = dma.done [#allocation6], 1024
    $region61: #{tpu_custom_call.1} parent=1 // pred_fallthru
      _
    %840 = vsyncpa [#allocation5], 1
    %841 = vsyncpa [#allocation8], 1
    %842 = vsyncpa [#allocation6], 1

</llo_original>
